<compile_context>
chip_gen: v7x
topology: tpu7x:2x2x1
jax: 0.10.0
libtpu: 0.0.40
codegen_flags: <defaults>
</compile_context>

<pallas_src>
import math

import jax
import jax.numpy as jnp
from jax.experimental import pallas as pl
from jax.experimental.pallas import tpu as pltpu

DIM = 2                            # matches `dim = 2` in the reference script
_LANES_MIN = 128                   # TPU lane width
_SUBLANES = 8                      # f32 sublane count
_TARGET_TILE_ELEMS = 512 * 1024    # ~2 MiB in + 4 MiB out per grid step


def _round_up(a: int, b: int) -> int:
    return -(-a // b) * b


def _cdiv(a: int, b: int) -> int:
    return -(-a // b)


def _encoder_kernel(w_ref, b_ref, x_ref, o_ref):
    # w_ref, b_ref : SMEM (DIM,) f32 -- scalar reads, no per-tile DMA.
    # x_ref        : VMEM (r_tile, lanes) input tile (native dtype).
    # o_ref        : VMEM (DIM, r_tile, lanes) f32 -- full-width unmasked vst.
    xv = x_ref[...].astype(jnp.float32)          # upcast in-kernel (free, VPU)
    for d in range(DIM):                         # DIM == 2, fully unrolled
        o_ref[d, :, :] = xv * w_ref[d] + b_ref[d]


def _plan(n: int):
    """Pick (lanes, r_tile, grid) for a dense (rows, lanes) view of flat x."""
    # Lane width: largest multiple of 128 (<= 1024) dividing n -> no pad copy.
    lanes = _LANES_MIN
    for cand in (1024, 512, 256, 128):
        if n % cand == 0:
            lanes = cand
            break
    rows = _cdiv(n, lanes)

    # Rows per grid step: ~_TARGET_TILE_ELEMS elements, multiple of 8.
    r_tile = min(
        _round_up(rows, _SUBLANES),
        max(_SUBLANES, (_TARGET_TILE_ELEMS // lanes) // _SUBLANES * _SUBLANES),
    )
    # Keep the parallel grid >= 2 when there is enough work (both v7x cores).
    if r_tile >= rows and rows >= 2 * _SUBLANES and rows % (2 * _SUBLANES) == 0:
        r_tile = rows // 2

    grid = _cdiv(rows, r_tile)
    if rows % r_tile:
        # Shrink the last-tile overhang (minimize padding) at the same grid.
        r_tile = _round_up(_cdiv(rows, grid), _SUBLANES)
        grid = _cdiv(rows, r_tile)
    return lanes, r_tile, grid


@jax.jit
def encoder_forward(x, weight, bias):
    """x: (..., 1); weight: (DIM, 1); bias: (DIM,)  ->  (..., DIM) float32."""
    orig_shape = x.shape
    assert orig_shape[-1] == 1, "Encoder expects last dim == 1"
    n = math.prod(orig_shape[:-1])

    lanes, r_tile, grid = _plan(n)
    rows_pad = grid * r_tile
    n_pad = rows_pad * lanes

    x_flat = x.reshape(n)                        # metadata-only view
    if n_pad != n:
        # Ragged sizes only; lane/tile-aligned inputs skip this copy entirely.
        x_flat = jnp.pad(x_flat, (0, n_pad - n))
    x_slab = x_flat.reshape(rows_pad, lanes)     # native dtype; upcast in-kernel

    w = weight.reshape(DIM).astype(jnp.float32)
    b = bias.reshape(DIM).astype(jnp.float32)

    out = pl.pallas_call(
        _encoder_kernel,
        out_shape=jax.ShapeDtypeStruct((DIM, rows_pad, lanes), jnp.float32),
        grid=(grid,),
        in_specs=[
            pl.BlockSpec(memory_space=pltpu.MemorySpace.SMEM),   # weight (DIM,)
            pl.BlockSpec(memory_space=pltpu.MemorySpace.SMEM),   # bias   (DIM,)
            pl.BlockSpec((r_tile, lanes), lambda i: (i, 0)),     # x tile
        ],
        out_specs=pl.BlockSpec((DIM, r_tile, lanes), lambda i: (0, i, 0)),
        compiler_params=pltpu.CompilerParams(
            dimension_semantics=("parallel",),
            vmem_limit_bytes=32 * 1024 * 1024,   # headroom; ~12 MiB actually used
        ),
    )(w, b, x_slab)

    # One fused XLA pass: drop padding + (DIM, N) -> (N, DIM).
    out = out.reshape(DIM, n_pad)[:, :n]
    return out.T.reshape(*orig_shape[:-1], DIM)


if __name__ == "__main__":
    key = jax.random.PRNGKey(0)
    kx, kw, kb, kx2 = jax.random.split(key, 4)

    # Linear(1, dim) params: U(-1, 1), like torch's default bound 1/sqrt(1) = 1.
    weight = jax.random.uniform(kw, (DIM, 1), minval=-1.0, maxval=1.0,
                                dtype=jnp.float32)
    bias = jax.random.uniform(kb, (DIM,), minval=-1.0, maxval=1.0,
                              dtype=jnp.float32)

    # Small input consistent with the module: (batch=2, seq=8, features=1).
    x = jax.random.normal(kx, (2, 8, 1), dtype=jnp.float32)
    out = jax.block_until_ready(encoder_forward(x, weight, bias))
    ref = x @ weight.T + bias
    assert out.shape == (2, 8, DIM)
    assert jnp.allclose(out, ref, atol=1e-6, rtol=1e-6), "mismatch vs reference"

    # Lane-aligned case: exercises the copy-free, multi-tile (grid=2) path.
    x2 = jax.random.normal(kx2, (16, 1024, 1), dtype=jnp.float32)
    out2 = jax.block_until_ready(encoder_forward(x2, weight, bias))
    ref2 = x2 @ weight.T + bias
    assert out2.shape == (16, 1024, DIM)
    assert jnp.allclose(out2, ref2, atol=1e-6, rtol=1e-6), "mismatch vs reference"

    print("KERNEL_OK")
</pallas_src>

<mosaic_0001>
module attributes {stable_mosaic.version = 11 : i64} {
  func.func @_encoder_kernel(%arg0: i32, %arg1: memref<2xf32, #tpu.memory_space<smem>>, %arg2: memref<2xf32, #tpu.memory_space<smem>>, %arg3: memref<8x128xf32, #tpu.memory_space<vmem>>, %arg4: memref<2x8x128xf32, #tpu.memory_space<vmem>>) attributes {dimension_semantics = [#tpu.dimension_semantics<parallel>], iteration_bounds = array<i64: 1>, scalar_prefetch = 0 : i64, scratch_operands = 0 : i64, tpu.core_type = #tpu.core_type<tc>, window_params = [{transform_indices = @transform_0, window_bounds = array<i64: 2>}, {transform_indices = @transform_1, window_bounds = array<i64: 2>}, {transform_indices = @transform_2, window_bounds = array<i64: 8, 128>}, {transform_indices = @transform_3, window_bounds = array<i64: 2, 8, 128>}]} {
    %c0 = arith.constant 0 : index
    %c0_0 = arith.constant 0 : index
    %0 = vector.load %arg3[%c0, %c0_0] : memref<8x128xf32, #tpu.memory_space<vmem>>, vector<8x128xf32>
    %c0_1 = arith.constant 0 : index
    %1 = memref.load %arg1[%c0_1] : memref<2xf32, #tpu.memory_space<smem>>
    %2 = vector.broadcast %1 : f32 to vector<8x128xf32>
    %3 = arith.mulf %0, %2 : vector<8x128xf32>
    %c0_2 = arith.constant 0 : index
    %4 = memref.load %arg2[%c0_2] : memref<2xf32, #tpu.memory_space<smem>>
    %5 = vector.broadcast %4 : f32 to vector<8x128xf32>
    %6 = arith.addf %3, %5 : vector<8x128xf32>
    %c0_3 = arith.constant 0 : index
    %c0_4 = arith.constant 0 : index
    %c0_5 = arith.constant 0 : index
    %7 = vector.load %arg4[%c0_3, %c0_4, %c0_5] : memref<2x8x128xf32, #tpu.memory_space<vmem>>, vector<1x8x128xf32>
    %8 = vector.shape_cast %7 : vector<1x8x128xf32> to vector<8x128xf32>
    %9 = vector.shape_cast %6 : vector<8x128xf32> to vector<1x8x128xf32>
    tpu.vector_store %arg4[%c0_3, %c0_4, %c0_5], %9 {strides = array<i32>} : memref<2x8x128xf32, #tpu.memory_space<vmem>>, vector<1x8x128xf32>,
    %c1 = arith.constant 1 : index
    %10 = memref.load %arg1[%c1] : memref<2xf32, #tpu.memory_space<smem>>
    %11 = vector.broadcast %10 : f32 to vector<8x128xf32>
    %12 = arith.mulf %0, %11 : vector<8x128xf32>
    %c1_6 = arith.constant 1 : index
    %13 = memref.load %arg2[%c1_6] : memref<2xf32, #tpu.memory_space<smem>>
    %14 = vector.broadcast %13 : f32 to vector<8x128xf32>
    %15 = arith.addf %12, %14 : vector<8x128xf32>
    %c1_7 = arith.constant 1 : index
    %c0_8 = arith.constant 0 : index
    %c0_9 = arith.constant 0 : index
    %16 = vector.load %arg4[%c1_7, %c0_8, %c0_9] : memref<2x8x128xf32, #tpu.memory_space<vmem>>, vector<1x8x128xf32>
    %17 = vector.shape_cast %16 : vector<1x8x128xf32> to vector<8x128xf32>
    %18 = vector.shape_cast %15 : vector<8x128xf32> to vector<1x8x128xf32>
    tpu.vector_store %arg4[%c1_7, %c0_8, %c0_9], %18 {strides = array<i32>} : memref<2x8x128xf32, #tpu.memory_space<vmem>>, vector<1x8x128xf32>,
    return
  }
  func.func @transform_0(%arg0: i32) -> i32 {
    %c0_i32 = arith.constant 0 : i32
    %c0_i32_0 = arith.constant 0 : i32
    return %c0_i32 : i32
  }
  func.func @transform_1(%arg0: i32) -> i32 {
    %c0_i32 = arith.constant 0 : i32
    %c0_i32_0 = arith.constant 0 : i32
    return %c0_i32 : i32
  }
  func.func @transform_2(%arg0: i32) -> (i32, i32) {
    %c0_i32 = arith.constant 0 : i32
    %c0_i32_0 = arith.constant 0 : i32
    return %arg0, %c0_i32 : i32, i32
  }
  func.func @transform_3(%arg0: i32) -> (i32, i32, i32) {
    %c0_i32 = arith.constant 0 : i32
    %c0_i32_0 = arith.constant 0 : i32
    %c0_i32_1 = arith.constant 0 : i32
    return %c0_i32, %arg0, %c0_i32_0 : i32, i32, i32
  }
}

</mosaic_0001>

<llo_original>
// kernel: encoder_forward.1
$region0: #{encoder_forward.1}
  #allocation0 [shape = 'u32[]', space=smem, size = 0x4, offset = 0x4, fixed_abs, tag = 'smem constant byte address 0x4 - core index']
  #allocation1 [shape = 'u32[144,128]{1,0:T(1,128)}', space=vmem, size = 0x12000, scoped, tag = 'internal scratch']
  %s0 = inlined_call_operand.vmem [shape: f32[2], index: 0, kind: input, shape index: {}]
  %s1 = inlined_call_operand.vmem [shape: f32[2], index: 1, kind: input, shape index: {}]
  %s2 = inlined_call_operand.vmem [shape: f32[8,128], index: 2, kind: input, shape index: {}]
  %s3 = inlined_call_operand.vmem [shape: f32[2,8,128], index: 3, kind: output, shape index: {}]
  %s4 = sld [smem:[#allocation0]]
  $region30: #{encoder_forward.1} parent=0
    _
  %s6 = ssub.s32 1, %s4
  %s7 = scalar_select 0, %s6, %s4
  $region1: #{encoder_forward.1} parent=0
    #allocation2 [shape = 'u8[512]{0}', space=smem, size = 0x200, scoped, tag = 'input window, operand 0, single buffered']
    #allocation3 [shape = 's32[1]{0}', space=sflag, size = 0x4, scoped, tag = 'scoped memory for encoder_forward.1']
    #allocation4 [shape = 'u8[512]{0}', space=smem, size = 0x200, scoped, tag = 'input window, operand 1, single buffered']
    #allocation5 [shape = 's32[1]{0}', space=sflag, size = 0x4, scoped, tag = 'scoped memory for encoder_forward.1']
    %8 = vsyncpa [#allocation3], 0
    %9 = vsyncpa [#allocation5], 0
    // Predicated region
    $region2: #{encoder_forward.1} parent=1 // pred_check
      _
    $region3: #{encoder_forward.1} parent=1 // pred_check_branch
      %11 = sbr.rel (0) target = $region5
    $region4: #{encoder_forward.1} parent=1 // pred_region
      %s13 = ssub.s32 16, 16
      %14 = vsyncadd [#allocation3], %s13
      %s16 = sshll.u32 %s0, 4
      %s17 = int_to_ptr.vmem [resolvable:$true] %s16
      %19 = dma.vmem_to_smem %s17, 16, [#allocation2], [#allocation3]
    $region5: #{encoder_forward.1} parent=1 // pred_fallthru
      _
    // Predicated region
    $region6: #{encoder_forward.1} parent=1 // pred_check
      _
    $region7: #{encoder_forward.1} parent=1 // pred_check_branch
      %21 = sbr.rel (0) target = $region9
    $region8: #{encoder_forward.1} parent=1 // pred_region
      %s23 = ssub.s32 16, 16
      %24 = vsyncadd [#allocation5], %s23
      %s26 = sshll.u32 %s1, 4
      %s27 = int_to_ptr.vmem [resolvable:$true] %s26
      %29 = dma.vmem_to_smem %s27, 16, [#allocation4], [#allocation5]
    $region9: #{encoder_forward.1} parent=1 // pred_fallthru
      _
    // Predicated region
    $region10: #{encoder_forward.1} parent=1 // pred_check
      _
    $region11: #{encoder_forward.1} parent=1 // pred_check_branch
      %31 = sbr.rel (0) target = $region13
    $region12: #{encoder_forward.1} parent=1 // pred_region
      _
    $region13: #{encoder_forward.1} parent=1 // pred_fallthru
      _
    // Predicated region
    $region14: #{encoder_forward.1} parent=1 // pred_check
      _
    $region15: #{encoder_forward.1} parent=1 // pred_check_branch
      %33 = sbr.rel (0) target = $region17
    $region16: #{encoder_forward.1} parent=1 // pred_region
      %34 = dma.done [#allocation3], 16
    $region17: #{encoder_forward.1} parent=1 // pred_fallthru
      _
    // Predicated region
    $region18: #{encoder_forward.1} parent=1 // pred_check
      _
    $region19: #{encoder_forward.1} parent=1 // pred_check_branch
      %36 = sbr.rel (0) target = $region21
    $region20: #{encoder_forward.1} parent=1 // pred_region
      %37 = dma.done [#allocation5], 16
    $region21: #{encoder_forward.1} parent=1 // pred_fallthru
      _
    %38 = sfence
    %v39 = vld [vmem:[%s2] sm:$0xff]
    %s40 = sld [smem:[#allocation2]]
    %v41 = vstv %s40
    %v42 = vmul.f32 %v39, %v41
    %s43 = sld [smem:[#allocation4]]
    %v44 = vstv %s43
    %v45 = vadd.f32 %v42, %v44
    %46 = vst [vmem:[%s3] sm:$0xff] %v45
    %s47 = sld [smem:[#allocation2 + $0x1]]
    %v48 = vstv %s47
    %v49 = vmul.f32 %v39, %v48
    %s50 = sld [smem:[#allocation4 + $0x1]]
    %v51 = vstv %s50
    %v52 = vadd.f32 %v49, %v51
    %s53 = scalar_lea.vmem %s3, 8
    %54 = vst [vmem:[%s53] sm:$0xff] %v52
    // Predicated region
    $region22: #{encoder_forward.1} parent=1 // pred_check
      _
    $region23: #{encoder_forward.1} parent=1 // pred_check_branch
      %56 = sbr.rel (0) target = $region25
    $region24: #{encoder_forward.1} parent=1 // pred_region
      _
    $region25: #{encoder_forward.1} parent=1 // pred_fallthru
      _
    // Predicated region
    $region26: #{encoder_forward.1} parent=1 // pred_check
      _
    $region27: #{encoder_forward.1} parent=1 // pred_check_branch
      %58 = sbr.rel (0) target = $region29
    $region28: #{encoder_forward.1} parent=1 // pred_region
      _
    $region29: #{encoder_forward.1} parent=1 // pred_fallthru
      _
    %59 = vsyncpa [#allocation3], 1
    %60 = vsyncpa [#allocation5], 1

</llo_original>
